<compile_context>
chip_gen: v6e
topology: v6e:2x2x1
jax: 0.10.0
libtpu: 0.0.40
codegen_flags: <defaults>
</compile_context>

<pallas_src>
import functools
import math

import jax
import jax.numpy as jnp
from jax import lax
from jax.experimental import pallas as pl
from jax.experimental.pallas import tpu as pltpu

LN_EPS = 1e-12  # BERT-style LayerNorm eps


def _gelu_erf(x):
    # exact (erf) GELU, matching torch.nn.functional.gelu default / ACT2FN["gelu"]
    return 0.5 * x * (1.0 + lax.erf(x * (1.0 / jnp.sqrt(2.0).astype(x.dtype))))


def adapter_self_output_kernel(
    x_ref,        # (TM, H)  hidden_states tile
    inp_ref,      # (TM, H)  input_tensor tile (residual into LayerNorm)
    wd_ref,       # (H, H)   dense weight (already [in, out])
    bd_ref,       # (1, H)
    wdn_ref,      # (H, A)   adapter down weight (A padded to a multiple of 128)
    bdn_ref,      # (1, A)
    wup_ref,      # (A, H)   adapter up weight
    bup_ref,      # (1, H)
    gamma_ref,    # (1, H)   LayerNorm weight
    beta_ref,     # (1, H)   LayerNorm bias
    o_ref,        # (TM, H)
):
    # self_out.dense: native-dtype MXU matmul (bf16 fast path when weights are bf16),
    # f32 accumulation via preferred_element_type.
    h = jnp.dot(x_ref[...], wd_ref[...], preferred_element_type=jnp.float32)
    h = h + bd_ref[...].astype(jnp.float32)
    # self_out.dropout -> identity (eval)

    # adapter: down -> gelu -> up -> residual.  Cast the f32 accumulator back to the
    # weight dtype before feeding the MXU again (identity when weights are f32).
    d = jnp.dot(h.astype(wdn_ref.dtype), wdn_ref[...], preferred_element_type=jnp.float32)
    d = _gelu_erf(d + bdn_ref[...].astype(jnp.float32))
    u = jnp.dot(d.astype(wup_ref.dtype), wup_ref[...], preferred_element_type=jnp.float32)
    u = u + bup_ref[...].astype(jnp.float32)
    a = h + u

    # LayerNorm(adapter_out + input_tensor) over hidden, in f32.  Rows are independent,
    # so garbage rows in a ragged trailing block are harmless (their stores are masked).
    z = a + inp_ref[...].astype(jnp.float32)
    mean = jnp.mean(z, axis=-1, keepdims=True)
    var = jnp.mean(jnp.square(z - mean), axis=-1, keepdims=True)
    y = (z - mean) * lax.rsqrt(var + LN_EPS)
    y = y * gamma_ref[...].astype(jnp.float32) + beta_ref[...].astype(jnp.float32)

    o_ref[...] = y.astype(o_ref.dtype)


def _round_up(x, m):
    return ((x + m - 1) // m) * m


def prepare_params(params, weight_dtype=None, lane_pad=128):
    """One-time weight prep.

    * Zero-pads the adapter dim A up to a multiple of `lane_pad` (128) so the adapter
      matmuls are lane-dense and the up-proj contraction depth fills the MXU.  The math
      is exact: gelu(0) = 0 and the padded rows of w_up are zero.
    * Optionally casts everything to `weight_dtype` (pass jnp.bfloat16 for the fast MXU
      path on v5e/v6e/v7x; halves resident-weight VMEM, important on v7x's 64 MiB).
    """
    p = dict(params)
    A = p["w_down"].shape[1]
    A_pad = _round_up(A, lane_pad)
    if A_pad != A:
        p["w_down"] = jnp.pad(p["w_down"], ((0, 0), (0, A_pad - A)))
        p["b_down"] = jnp.pad(p["b_down"], ((0, 0), (0, A_pad - A)))
        p["w_up"] = jnp.pad(p["w_up"], ((0, A_pad - A), (0, 0)))
    if weight_dtype is not None:
        p = {k: v.astype(weight_dtype) for k, v in p.items()}
    return p


def _select_tiling(T, H, A, act_itemsize, weight_itemsize, input_buffers=2, tile_m=None):
    """Pick token-tile size and a vmem limit from the (per-generation) VMEM capacity."""
    try:
        info = pltpu.get_tpu_info()
        vmem_cap = int(getattr(info, "vmem_capacity_bytes", 64 * 1024 * 1024))
    except Exception:
        vmem_cap = 64 * 1024 * 1024  # conservative (v7x-sized) fallback
    budget = int(vmem_cap * 0.75)    # headroom for compiler-internal scratch

    # Resident, single-buffered weights + biases.
    weight_bytes = ((H * H) + 2 * (H * A) + 4 * H + A) * weight_itemsize

    def need(tm):
        per_tile = (
            input_buffers * 2 * tm * H * act_itemsize   # x + input_tensor, N-buffered
            + 2 * tm * H * act_itemsize                 # output, double-buffered
            + 6 * tm * max(H, A) * 4                    # f32 temporaries (h/d/u/z/y)
        )
        return weight_bytes + per_tile

    # Big tiles amortise the ~0.35us per-step overhead on 128 MiB chips (v5e/v6e);
    # stay conservative on 64 MiB v7x.
    max_tm = 1024 if vmem_cap > (96 << 20) else 384
    if tile_m is None:
        tm = 128
        for cand in (1024, 512, 384, 256, 128):
            if cand <= max_tm and need(cand) <= budget:
                tm = cand
                break
    else:
        tm = tile_m

    # Don't use a tile much larger than the problem (sublane-aligned).
    tm = min(tm, max(8, _round_up(T, 8)))

    # Guarantee >=2 grid steps when T is large enough so both v7x TensorCores get work
    # (near-zero cost on single-core v5e/v6e).
    if T >= 256 and pl.cdiv(T, tm) < 2:
        tm = max(128, _round_up(pl.cdiv(T, 2), 128))

    vmem_limit = int(min(budget, max(need(tm) + (8 << 20), 32 << 20)))
    return tm, vmem_limit


@functools.partial(jax.jit, static_argnames=("tile_m", "vmem_limit_bytes", "input_buffers"))
def _adapter_self_output_call(hidden_states, input_tensor, params, *, tile_m,
                              vmem_limit_bytes, input_buffers):
    B, S, H = hidden_states.shape
    A = params["w_down"].shape[1]
    T = B * S
    tm = tile_m

    x2 = hidden_states.reshape(T, H)
    i2 = input_tensor.reshape(T, H)

    # Ragged last block handled by Pallas (masked stores); no wrapper-side pad/slice.
    grid = (pl.cdiv(T, tm),)

    if input_buffers == 2:
        row_spec = pl.BlockSpec((tm, H), lambda i: (i, 0))
    else:
        # Worth sweeping Buffered(3) on v6e when DMA-limited.
        row_spec = pl.BlockSpec((tm, H), lambda i: (i, 0),
                                pipeline_mode=pl.Buffered(input_buffers))
    out_spec = pl.BlockSpec((tm, H), lambda i: (i, 0))

    def resident(shape):
        # Constant block index across the grid -> single-buffer (halves their VMEM
        # residency; matters on v7x's 64 MiB VMEM).
        return pl.BlockSpec(shape, lambda i: (0, 0), pipeline_mode=pl.Buffered(1))

    # Advisory cost estimate so XLA schedules neighbouring ops around the custom call.
    w_bytes = sum(math.prod(v.shape) * v.dtype.itemsize for v in params.values())
    act_bytes = 3 * T * H * hidden_states.dtype.itemsize
    cost = pl.CostEstimate(
        flops=2 * T * H * (H + 2 * A) + 12 * T * H,
        transcendentals=T * (A + 1),          # gelu(erf) + rsqrt
        bytes_accessed=act_bytes + w_bytes,
    )

    # NOTE: W_dense is kept fully resident (no K/N tiling).  For f32 H>=2048 or bf16
    # H>=4096 on v7x, add an extra "arbitrary" grid axis with an f32 VMEM accumulator.
    out = pl.pallas_call(
        adapter_self_output_kernel,
        out_shape=jax.ShapeDtypeStruct((T, H), hidden_states.dtype),
        grid_spec=pltpu.PrefetchScalarGridSpec(
            num_scalar_prefetch=0,
            grid=grid,
            in_specs=[
                row_spec,                     # hidden_states tile
                row_spec,                     # input_tensor tile
                resident((H, H)),             # dense weight
                resident((1, H)),             # dense bias
                resident((H, A)),             # down weight
                resident((1, A)),             # down bias
                resident((A, H)),             # up weight
                resident((1, H)),             # up bias
                resident((1, H)),             # LN gamma
                resident((1, H)),             # LN beta
            ],
            out_specs=out_spec,
        ),
        compiler_params=pltpu.CompilerParams(
            dimension_semantics=("parallel",),         # megacore-shard token axis (v7x)
            vmem_limit_bytes=vmem_limit_bytes,
        ),
        cost_estimate=cost,
    )(
        x2, i2,
        params["w_dense"], params["b_dense"],
        params["w_down"], params["b_down"],
        params["w_up"], params["b_up"],
        params["ln_gamma"], params["ln_beta"],
    )
    return out.reshape(B, S, H)


def adapter_self_output(hidden_states, input_tensor, params, tile_m=None, input_buffers=2):
    """hidden_states, input_tensor: [B, S, H]; params from prepare_params; returns [B, S, H]."""
    B, S, H = hidden_states.shape
    A = params["w_down"].shape[1]
    T = B * S
    act_itemsize = jnp.dtype(hidden_states.dtype).itemsize
    weight_itemsize = jnp.dtype(params["w_dense"].dtype).itemsize
    tm, vmem_limit = _select_tiling(T, H, A, act_itemsize, weight_itemsize,
                                    input_buffers=input_buffers, tile_m=tile_m)
    return _adapter_self_output_call(hidden_states, input_tensor, params,
                                     tile_m=tm, vmem_limit_bytes=vmem_limit,
                                     input_buffers=input_buffers)


def init_params(key, hidden_size, adapter_size, adapter_initializer_range=1e-3,
                dtype=jnp.float32):
    """Synthetic parameters mirroring the PyTorch module's shapes.

    PyTorch Linear stores weight as [out, in]; we store the transposed [in, out] so the
    kernel computes x @ W (same math as x @ weight.T).  Run `prepare_params` on the
    result (pads A to a multiple of 128; pass weight_dtype=jnp.bfloat16 for production).
    """
    k1, k2, k3 = jax.random.split(key, 3)
    bound = 1.0 / jnp.sqrt(hidden_size)
    w_dense = jax.random.uniform(k1, (hidden_size, hidden_size), jnp.float32, -bound, bound)
    b_dense = jnp.zeros((1, hidden_size), jnp.float32)
    w_down = adapter_initializer_range * jax.random.normal(
        k2, (hidden_size, adapter_size), jnp.float32)
    b_down = jnp.zeros((1, adapter_size), jnp.float32)
    w_up = adapter_initializer_range * jax.random.normal(
        k3, (adapter_size, hidden_size), jnp.float32)
    b_up = jnp.zeros((1, hidden_size), jnp.float32)
    ln_gamma = jnp.ones((1, hidden_size), jnp.float32)
    ln_beta = jnp.zeros((1, hidden_size), jnp.float32)
    p = dict(
        w_dense=w_dense, b_dense=b_dense,
        w_down=w_down, b_down=b_down,
        w_up=w_up, b_up=b_up,
        ln_gamma=ln_gamma, ln_beta=ln_beta,
    )
    return {k: v.astype(dtype) for k, v in p.items()}


def reference(hidden_states, input_tensor, p):
    """Pure-JAX reference of the same forward (for a sanity check)."""
    h = hidden_states @ p["w_dense"] + p["b_dense"][0]
    d = _gelu_erf(h @ p["w_down"] + p["b_down"][0])
    u = d @ p["w_up"] + p["b_up"][0]
    z = h + u + input_tensor
    mean = jnp.mean(z, axis=-1, keepdims=True)
    var = jnp.mean(jnp.square(z - mean), axis=-1, keepdims=True)
    return (z - mean) * lax.rsqrt(var + LN_EPS) * p["ln_gamma"][0] + p["ln_beta"][0]


if __name__ == "__main__":
    B, S, H, A = 2, 8, 32, 16  # batch, seq, hidden_size, adapter_size (small test shapes)

    key = jax.random.PRNGKey(0)
    kx, ki, kp = jax.random.split(key, 3)
    hidden_states = jax.random.normal(kx, (B, S, H), jnp.float32)
    input_tensor = jax.random.normal(ki, (B, S, H), jnp.float32)
    params = init_params(kp, H, A)

    ref = reference(hidden_states, input_tensor, params)

    # f32 weights: adapter-dim padding is mathematically exact, so strict tolerance holds.
    p_f32 = prepare_params(params)  # pads A: 16 -> 128
    out = jax.block_until_ready(adapter_self_output(hidden_states, input_tensor, p_f32))
    assert out.shape == (B, S, H)
    assert jnp.allclose(out, ref, atol=1e-4, rtol=1e-4), "f32 mismatch vs reference"

    # bf16 weights (production fast-MXU path): loose tolerance against the f32 reference.
    p_bf16 = prepare_params(params, weight_dtype=jnp.bfloat16)
    out_bf = jax.block_until_ready(adapter_self_output(hidden_states, input_tensor, p_bf16))
    assert bool(jnp.all(jnp.isfinite(out_bf))), "bf16 path produced non-finite values"
    assert jnp.allclose(out_bf, ref, atol=0.1, rtol=0.1), "bf16 path diverged"

    # TODO(synk): dropout is identity (eval mode); training-mode dropout would need pltpu PRNG.
    print("KERNEL_OK")
</pallas_src>

<mosaic_0001>
module attributes {stable_mosaic.version = 11 : i64} {
  func.func @adapter_self_output_kernel(%arg0: i32, %arg1: memref<16x32xf32, #tpu.memory_space<vmem>>, %arg2: memref<16x32xf32, #tpu.memory_space<vmem>>, %arg3: memref<32x32xf32, #tpu.memory_space<vmem>>, %arg4: memref<1x32xf32, #tpu.memory_space<vmem>>, %arg5: memref<32x128xf32, #tpu.memory_space<vmem>>, %arg6: memref<1x128xf32, #tpu.memory_space<vmem>>, %arg7: memref<128x32xf32, #tpu.memory_space<vmem>>, %arg8: memref<1x32xf32, #tpu.memory_space<vmem>>, %arg9: memref<1x32xf32, #tpu.memory_space<vmem>>, %arg10: memref<1x32xf32, #tpu.memory_space<vmem>>, %arg11: memref<16x32xf32, #tpu.memory_space<vmem>>) attributes {dimension_semantics = [#tpu.dimension_semantics<parallel>], iteration_bounds = array<i64: 1>, scalar_prefetch = 0 : i64, scratch_operands = 0 : i64, tpu.core_type = #tpu.core_type<tc>, window_params = [{transform_indices = @transform_0, window_bounds = array<i64: 16, 32>}, {transform_indices = @transform_1, window_bounds = array<i64: 16, 32>}, {pipeline_mode = #tpu.pipeline_mode<synchronous>, transform_indices = @transform_2, window_bounds = array<i64: 32, 32>}, {pipeline_mode = #tpu.pipeline_mode<synchronous>, transform_indices = @transform_3, window_bounds = array<i64: 1, 32>}, {pipeline_mode = #tpu.pipeline_mode<synchronous>, transform_indices = @transform_4, window_bounds = array<i64: 32, 128>}, {pipeline_mode = #tpu.pipeline_mode<synchronous>, transform_indices = @transform_5, window_bounds = array<i64: 1, 128>}, {pipeline_mode = #tpu.pipeline_mode<synchronous>, transform_indices = @transform_6, window_bounds = array<i64: 128, 32>}, {pipeline_mode = #tpu.pipeline_mode<synchronous>, transform_indices = @transform_7, window_bounds = array<i64: 1, 32>}, {pipeline_mode = #tpu.pipeline_mode<synchronous>, transform_indices = @transform_8, window_bounds = array<i64: 1, 32>}, {pipeline_mode = #tpu.pipeline_mode<synchronous>, transform_indices = @transform_9, window_bounds = array<i64: 1, 32>}, {transform_indices = @transform_10, window_bounds = array<i64: 16, 32>}]} {
    %c0 = arith.constant 0 : index
    %c0_0 = arith.constant 0 : index
    %0 = vector.load %arg1[%c0, %c0_0] : memref<16x32xf32, #tpu.memory_space<vmem>>, vector<16x32xf32>
    %c0_1 = arith.constant 0 : index
    %c0_2 = arith.constant 0 : index
    %1 = vector.load %arg3[%c0_1, %c0_2] : memref<32x32xf32, #tpu.memory_space<vmem>>, vector<32x32xf32>
    %cst = arith.constant dense<0.000000e+00> : vector<16x32xf32>
    %2 = tpu.matmul %0, %1, %cst {dimension_numbers = #tpu.dot_dimension_numbers<[1], [0], [0], [1], [0, 0, 1, 1], [], []>} : vector<16x32xf32>, vector<32x32xf32>, vector<16x32xf32> -> vector<16x32xf32>
    %c0_3 = arith.constant 0 : index
    %c0_4 = arith.constant 0 : index
    %3 = vector.load %arg4[%c0_3, %c0_4] : memref<1x32xf32, #tpu.memory_space<vmem>>, vector<1x32xf32>
    %4 = vector.broadcast %3 : vector<1x32xf32> to vector<16x32xf32>
    %5 = arith.addf %2, %4 : vector<16x32xf32>
    %c0_5 = arith.constant 0 : index
    %c0_6 = arith.constant 0 : index
    %6 = vector.load %arg5[%c0_5, %c0_6] : memref<32x128xf32, #tpu.memory_space<vmem>>, vector<32x128xf32>
    %cst_7 = arith.constant dense<0.000000e+00> : vector<16x128xf32>
    %7 = tpu.matmul %5, %6, %cst_7 {dimension_numbers = #tpu.dot_dimension_numbers<[1], [0], [0], [1], [0, 0, 1, 1], [], []>} : vector<16x32xf32>, vector<32x128xf32>, vector<16x128xf32> -> vector<16x128xf32>
    %c0_8 = arith.constant 0 : index
    %c0_9 = arith.constant 0 : index
    %8 = vector.load %arg6[%c0_8, %c0_9] : memref<1x128xf32, #tpu.memory_space<vmem>>, vector<1x128xf32>
    %9 = vector.broadcast %8 : vector<1x128xf32> to vector<16x128xf32>
    %10 = arith.addf %7, %9 : vector<16x128xf32>
    %cst_10 = arith.constant 5.000000e-01 : f32
    %11 = vector.broadcast %cst_10 : f32 to vector<16x128xf32>
    %12 = arith.mulf %11, %10 : vector<16x128xf32>
    %cst_11 = arith.constant 2.000000e+00 : f32
    %13 = math.sqrt %cst_11 : f32
    %cst_12 = arith.constant 1.000000e+00 : f32
    %14 = arith.divf %cst_12, %13 : f32
    %15 = vector.broadcast %14 : f32 to vector<16x128xf32>
    %16 = arith.mulf %10, %15 : vector<16x128xf32>
    %17 = math.erf %16 : vector<16x128xf32>
    %cst_13 = arith.constant 1.000000e+00 : f32
    %18 = vector.broadcast %cst_13 : f32 to vector<16x128xf32>
    %19 = arith.addf %18, %17 : vector<16x128xf32>
    %20 = arith.mulf %12, %19 : vector<16x128xf32>
    %c0_14 = arith.constant 0 : index
    %c0_15 = arith.constant 0 : index
    %21 = vector.load %arg7[%c0_14, %c0_15] : memref<128x32xf32, #tpu.memory_space<vmem>>, vector<128x32xf32>
    %cst_16 = arith.constant dense<0.000000e+00> : vector<16x32xf32>
    %22 = tpu.matmul %20, %21, %cst_16 {dimension_numbers = #tpu.dot_dimension_numbers<[1], [0], [0], [1], [0, 0, 1, 1], [], []>} : vector<16x128xf32>, vector<128x32xf32>, vector<16x32xf32> -> vector<16x32xf32>
    %c0_17 = arith.constant 0 : index
    %c0_18 = arith.constant 0 : index
    %23 = vector.load %arg8[%c0_17, %c0_18] : memref<1x32xf32, #tpu.memory_space<vmem>>, vector<1x32xf32>
    %24 = vector.broadcast %23 : vector<1x32xf32> to vector<16x32xf32>
    %25 = arith.addf %22, %24 : vector<16x32xf32>
    %26 = arith.addf %5, %25 : vector<16x32xf32>
    %c0_19 = arith.constant 0 : index
    %c0_20 = arith.constant 0 : index
    %27 = vector.load %arg2[%c0_19, %c0_20] : memref<16x32xf32, #tpu.memory_space<vmem>>, vector<16x32xf32>
    %28 = arith.addf %26, %27 : vector<16x32xf32>
    %cst_21 = arith.constant dense<0.000000e+00> : vector<16xf32>
    %29 = vector.multi_reduction <add>, %28, %cst_21 [1] : vector<16x32xf32> to vector<16xf32>
    %30 = vector.shape_cast %29 : vector<16xf32> to vector<16x1xf32>
    %cst_22 = arith.constant 3.200000e+01 : f32
    %31 = vector.broadcast %cst_22 : f32 to vector<16x1xf32>
    %32 = arith.divf %30, %31 : vector<16x1xf32>
    %33 = vector.broadcast %32 : vector<16x1xf32> to vector<16x32xf32>
    %34 = arith.subf %28, %33 : vector<16x32xf32>
    %35 = arith.mulf %34, %34 : vector<16x32xf32>
    %cst_23 = arith.constant dense<0.000000e+00> : vector<16xf32>
    %36 = vector.multi_reduction <add>, %35, %cst_23 [1] : vector<16x32xf32> to vector<16xf32>
    %37 = vector.shape_cast %36 : vector<16xf32> to vector<16x1xf32>
    %cst_24 = arith.constant 3.200000e+01 : f32
    %38 = vector.broadcast %cst_24 : f32 to vector<16x1xf32>
    %39 = arith.divf %37, %38 : vector<16x1xf32>
    %40 = vector.broadcast %32 : vector<16x1xf32> to vector<16x32xf32>
    %41 = arith.subf %28, %40 : vector<16x32xf32>
    %cst_25 = arith.constant 9.99999996E-13 : f32
    %42 = vector.broadcast %cst_25 : f32 to vector<16x1xf32>
    %43 = arith.addf %39, %42 : vector<16x1xf32>
    %44 = math.rsqrt %43 : vector<16x1xf32>
    %45 = vector.broadcast %44 : vector<16x1xf32> to vector<16x32xf32>
    %46 = arith.mulf %41, %45 : vector<16x32xf32>
    %c0_26 = arith.constant 0 : index
    %c0_27 = arith.constant 0 : index
    %47 = vector.load %arg9[%c0_26, %c0_27] : memref<1x32xf32, #tpu.memory_space<vmem>>, vector<1x32xf32>
    %48 = vector.broadcast %47 : vector<1x32xf32> to vector<16x32xf32>
    %49 = arith.mulf %46, %48 : vector<16x32xf32>
    %c0_28 = arith.constant 0 : index
    %c0_29 = arith.constant 0 : index
    %50 = vector.load %arg10[%c0_28, %c0_29] : memref<1x32xf32, #tpu.memory_space<vmem>>, vector<1x32xf32>
    %51 = vector.broadcast %50 : vector<1x32xf32> to vector<16x32xf32>
    %52 = arith.addf %49, %51 : vector<16x32xf32>
    %c0_30 = arith.constant 0 : index
    %c0_31 = arith.constant 0 : index
    %53 = vector.load %arg11[%c0_30, %c0_31] : memref<16x32xf32, #tpu.memory_space<vmem>>, vector<16x32xf32>
    tpu.vector_store %arg11[%c0_30, %c0_31], %52 {strides = array<i32>} : memref<16x32xf32, #tpu.memory_space<vmem>>, vector<16x32xf32>,
    return
  }
  func.func @transform_0(%arg0: i32) -> (i32, i32) {
    %c0_i32 = arith.constant 0 : i32
    %c0_i32_0 = arith.constant 0 : i32
    return %arg0, %c0_i32 : i32, i32
  }
  func.func @transform_1(%arg0: i32) -> (i32, i32) {
    %c0_i32 = arith.constant 0 : i32
    %c0_i32_0 = arith.constant 0 : i32
    return %arg0, %c0_i32 : i32, i32
  }
  func.func @transform_2(%arg0: i32) -> (i32, i32) {
    %c0_i32 = arith.constant 0 : i32
    %c0_i32_0 = arith.constant 0 : i32
    %c0_i32_1 = arith.constant 0 : i32
    return %c0_i32, %c0_i32_0 : i32, i32
  }
  func.func @transform_3(%arg0: i32) -> (i32, i32) {
    %c0_i32 = arith.constant 0 : i32
    %c0_i32_0 = arith.constant 0 : i32
    %c0_i32_1 = arith.constant 0 : i32
    return %c0_i32, %c0_i32_0 : i32, i32
  }
  func.func @transform_4(%arg0: i32) -> (i32, i32) {
    %c0_i32 = arith.constant 0 : i32
    %c0_i32_0 = arith.constant 0 : i32
    %c0_i32_1 = arith.constant 0 : i32
    return %c0_i32, %c0_i32_0 : i32, i32
  }
  func.func @transform_5(%arg0: i32) -> (i32, i32) {
    %c0_i32 = arith.constant 0 : i32
    %c0_i32_0 = arith.constant 0 : i32
    %c0_i32_1 = arith.constant 0 : i32
    return %c0_i32, %c0_i32_0 : i32, i32
  }
  func.func @transform_6(%arg0: i32) -> (i32, i32) {
    %c0_i32 = arith.constant 0 : i32
    %c0_i32_0 = arith.constant 0 : i32
    %c0_i32_1 = arith.constant 0 : i32
    return %c0_i32, %c0_i32_0 : i32, i32
  }
  func.func @transform_7(%arg0: i32) -> (i32, i32) {
    %c0_i32 = arith.constant 0 : i32
    %c0_i32_0 = arith.constant 0 : i32
    %c0_i32_1 = arith.constant 0 : i32
    return %c0_i32, %c0_i32_0 : i32, i32
  }
  func.func @transform_8(%arg0: i32) -> (i32, i32) {
    %c0_i32 = arith.constant 0 : i32
    %c0_i32_0 = arith.constant 0 : i32
    %c0_i32_1 = arith.constant 0 : i32
    return %c0_i32, %c0_i32_0 : i32, i32
  }
  func.func @transform_9(%arg0: i32) -> (i32, i32) {
    %c0_i32 = arith.constant 0 : i32
    %c0_i32_0 = arith.constant 0 : i32
    %c0_i32_1 = arith.constant 0 : i32
    return %c0_i32, %c0_i32_0 : i32, i32
  }
  func.func @transform_10(%arg0: i32) -> (i32, i32) {
    %c0_i32 = arith.constant 0 : i32
    %c0_i32_0 = arith.constant 0 : i32
    return %arg0, %c0_i32 : i32, i32
  }
}

</mosaic_0001>

<llo_original>
// kernel: _adapter_self_output_call.1
$region0: #{_adapter_self_output_call.1}
  #allocation0 [shape = 'u32[]', space=smem, size = 0x4, offset = 0x4, fixed_abs, tag = 'smem constant byte address 0x4 - core index']
  #allocation1 [shape = 'u32[144,128]{1,0:T(1,128)}', space=vmem, size = 0x12000, scoped, tag = 'internal scratch']
  %s0 = inlined_call_operand.vmem [shape: f32[16,32], index: 0, kind: input, shape index: {}]
  %s1 = inlined_call_operand.vmem [shape: f32[16,32], index: 1, kind: input, shape index: {}]
  %s2 = inlined_call_operand.vmem [shape: f32[32,32], index: 2, kind: input, shape index: {}]
  %s3 = inlined_call_operand.vmem [shape: f32[1,32], index: 3, kind: input, shape index: {}]
  %s4 = inlined_call_operand.vmem [shape: f32[32,128], index: 4, kind: input, shape index: {}]
  %s5 = inlined_call_operand.vmem [shape: f32[1,128], index: 5, kind: input, shape index: {}]
  %s6 = inlined_call_operand.vmem [shape: f32[128,32], index: 6, kind: input, shape index: {}]
  %s7 = inlined_call_operand.vmem [shape: f32[1,32], index: 7, kind: input, shape index: {}]
  %s8 = inlined_call_operand.vmem [shape: f32[1,32], index: 8, kind: input, shape index: {}]
  %s9 = inlined_call_operand.vmem [shape: f32[1,32], index: 9, kind: input, shape index: {}]
  %s10 = inlined_call_operand.hbm [shape: f32[16,32], index: 10, kind: output, shape index: {}]
  %s11 = sld [smem:[#allocation0]]
  $region50: #{_adapter_self_output_call.1} parent=0
    _
  %s13 = ssub.s32 1, %s11
  %s14 = scalar_select 0, %s13, %s11
  $region1: #{_adapter_self_output_call.1} parent=0
    #allocation2 [shape = 'u8[8192]{0}', space=vmem, size = 0x2000, scoped, tag = 'output window, operand 0, single buffered']
    #allocation3 [shape = 's32[1]{0}', space=sflag, size = 0x4, scoped, tag = 'scoped memory for _adapter_self_output_call.1']
    %15 = vsyncpa [#allocation3], 0
    // Predicated region
    $region2: #{_adapter_self_output_call.1} parent=1 // pred_check
      _
    $region3: #{_adapter_self_output_call.1} parent=1 // pred_check_branch
      %17 = sbr.rel (0) target = $region5
    $region4: #{_adapter_self_output_call.1} parent=1 // pred_region
      _
    $region5: #{_adapter_self_output_call.1} parent=1 // pred_fallthru
      _
    // Predicated region
    $region6: #{_adapter_self_output_call.1} parent=1 // pred_check
      _
    $region7: #{_adapter_self_output_call.1} parent=1 // pred_check_branch
      %19 = sbr.rel (0) target = $region9
    $region8: #{_adapter_self_output_call.1} parent=1 // pred_region
      _
    $region9: #{_adapter_self_output_call.1} parent=1 // pred_fallthru
      _
    // Predicated region
    $region10: #{_adapter_self_output_call.1} parent=1 // pred_check
      _
    $region11: #{_adapter_self_output_call.1} parent=1 // pred_check_branch
      %21 = sbr.rel (0) target = $region13
    $region12: #{_adapter_self_output_call.1} parent=1 // pred_region
      _
    $region13: #{_adapter_self_output_call.1} parent=1 // pred_fallthru
      _
    // Predicated region
    $region14: #{_adapter_self_output_call.1} parent=1 // pred_check
      _
    $region15: #{_adapter_self_output_call.1} parent=1 // pred_check_branch
      %23 = sbr.rel (0) target = $region17
    $region16: #{_adapter_self_output_call.1} parent=1 // pred_region
      _
    $region17: #{_adapter_self_output_call.1} parent=1 // pred_fallthru
      _
    // Predicated region
    $region18: #{_adapter_self_output_call.1} parent=1 // pred_check
      _
    $region19: #{_adapter_self_output_call.1} parent=1 // pred_check_branch
      %25 = sbr.rel (0) target = $region21
    $region20: #{_adapter_self_output_call.1} parent=1 // pred_region
      _
    $region21: #{_adapter_self_output_call.1} parent=1 // pred_fallthru
      _
    // Predicated region
    $region22: #{_adapter_self_output_call.1} parent=1 // pred_check
      _
    $region23: #{_adapter_self_output_call.1} parent=1 // pred_check_branch
      %27 = sbr.rel (0) target = $region25
    $region24: #{_adapter_self_output_call.1} parent=1 // pred_region
      _
    $region25: #{_adapter_self_output_call.1} parent=1 // pred_fallthru
      _
    // Predicated region
    $region26: #{_adapter_self_output_call.1} parent=1 // pred_check
      _
    $region27: #{_adapter_self_output_call.1} parent=1 // pred_check_branch
      %29 = sbr.rel (0) target = $region29
    $region28: #{_adapter_self_output_call.1} parent=1 // pred_region
      _
    $region29: #{_adapter_self_output_call.1} parent=1 // pred_fallthru
      _
    // Predicated region
    $region30: #{_adapter_self_output_call.1} parent=1 // pred_check
      _
    $region31: #{_adapter_self_output_call.1} parent=1 // pred_check_branch
      %31 = sbr.rel (0) target = $region33
    $region32: #{_adapter_self_output_call.1} parent=1 // pred_region
      _
    $region33: #{_adapter_self_output_call.1} parent=1 // pred_fallthru
      _
    // Predicated region
    $region34: #{_adapter_self_output_call.1} parent=1 // pred_check
      _
    $region35: #{_adapter_self_output_call.1} parent=1 // pred_check_branch
      %33 = sbr.rel (0) target = $region37
    $region36: #{_adapter_self_output_call.1} parent=1 // pred_region
      _
    $region37: #{_adapter_self_output_call.1} parent=1 // pred_fallthru
      _
    // Predicated region
    $region38: #{_adapter_self_output_call.1} parent=1 // pred_check
      _
    $region39: #{_adapter_self_output_call.1} parent=1 // pred_check_branch
      %35 = sbr.rel (0) target = $region41
    $region40: #{_adapter_self_output_call.1} parent=1 // pred_region
      _
    $region41: #{_adapter_self_output_call.1} parent=1 // pred_fallthru
      _
    %v36 = vld [vmem:[%s0] sm:$0xff]
    %v37 = vld [vmem:[%s0 + $0x8] sm:$0xff]
    %v38 = vld [vmem:[%s2] sm:$0xff]
    %v39 = vld [vmem:[%s2 + $0x8] sm:$0xff]
    %v40 = vld [vmem:[%s2 + $0x10] sm:$0xff]
    %v41 = vld [vmem:[%s2 + $0x18] sm:$0xff]
    %v42 = vld [vmem:[%s3] sm:$0x1]
    %v44 = vlaneseq
    %v45 = vshrl.u32 %v44, 7
    %v46 = vsub.s32 0, %v45
    %v47 = vrot.slane %v42, %v46
    %vm49 = vcmask 261120
    %v51 = vsel %vm49, %v36, 0
    %v54 = vsel %vm49, %v37, 0
    %56 = vmatprep.subr.mxu0 0.0
    %57 = vmatpush1.msra.mxu0 0.0
    %58 = vmatprep.subr.mxu0 0.0
    %59 = vmatpush1.msra.mxu0 0.0
    %60 = vmatprep.subr.mxu0 0.0
    %61 = vmatpush1.msra.mxu0 0.0
    %62 = vmatprep.subr.mxu0 0.0
    %63 = vmatpush1.msra.mxu0 0.0
    %64 = vmatprep.subr.mxu0 0.0
    %65 = vmatpush1.msra.mxu0 0.0
    %66 = vmatprep.subr.mxu0 0.0
    %67 = vmatpush1.msra.mxu0 0.0
    %68 = vmatprep.subr.mxu0 0.0
    %69 = vmatpush1.msra.mxu0 0.0
    %70 = vmatprep.subr.mxu0 0.0
    %71 = vmatpush1.msra.mxu0 0.0
    %72 = vmatprep.subr.mxu0 0.0
    %73 = vmatpush1.msra.mxu0 0.0
    %74 = vmatprep.subr.mxu0 0.0
    %75 = vmatpush1.msra.mxu0 0.0
    %76 = vmatprep.subr.mxu0 0.0
    %77 = vmatpush1.msra.mxu0 0.0
    %78 = vmatprep.subr.mxu0 0.0
    %79 = vmatpush1.msra.mxu0 0.0
    %80 = vmatprep.subr.mxu0 0.0
    %81 = vmatpush1.msra.mxu0 %v41
    %82 = vmatprep.subr.mxu0 0.0
    %83 = vmatpush1.msra.mxu0 %v40
    %84 = vmatprep.subr.mxu0 0.0
    %85 = vmatpush1.msra.mxu0 %v39
    %86 = vmatprep.subr.mxu0 0.0
    %87 = vmatpush1.msra.mxu0 %v38
    %88 = vmatprep.subr.mxu0 0.0
    %89 = vmatpush2.msra.mxu0 0.0
    %90 = vmatprep.subr.mxu0 0.0
    %91 = vmatpush2.msra.mxu0 0.0
    %92 = vmatprep.subr.mxu0 0.0
    %93 = vmatpush2.msra.mxu0 0.0
    %94 = vmatprep.subr.mxu0 0.0
    %95 = vmatpush2.msra.mxu0 0.0
    %96 = vmatprep.subr.mxu0 0.0
    %97 = vmatpush2.msra.mxu0 0.0
    %98 = vmatprep.subr.mxu0 0.0
    %99 = vmatpush2.msra.mxu0 0.0
    %100 = vmatprep.subr.mxu0 0.0
    %101 = vmatpush2.msra.mxu0 0.0
    %102 = vmatprep.subr.mxu0 0.0
    %103 = vmatpush2.msra.mxu0 0.0
    %104 = vmatprep.subr.mxu0 0.0
    %105 = vmatpush2.msra.mxu0 0.0
    %106 = vmatprep.subr.mxu0 0.0
    %107 = vmatpush2.msra.mxu0 0.0
    %108 = vmatprep.subr.mxu0 0.0
    %109 = vmatpush2.msra.mxu0 0.0
    %110 = vmatprep.subr.mxu0 0.0
    %111 = vmatpush2.msra.mxu0 0.0
    %112 = vmatprep.subr.mxu0 0.0
    %113 = vmatpush2.msra.mxu0 0.0
    %114 = vmatprep.subr.mxu0 0.0
    %115 = vmatpush2.msra.mxu0 0.0
    %116 = vmatprep.subr.mxu0 0.0
    %117 = vmatpush2.msra.mxu0 0.0
    %118 = vmatprep.subr.mxu0 0.0
    %119 = vmatpush2.msra.mxu0 0.0
    %120 = vmatprep.mubr.f32.mxu0 0.0
    %121 = vmatmul.mubr.f32.gmra.mxu0 %v51
    %v122 = vpop.f32.mrf.mxu0
    %v123 = vadd.f32 %v47, %v122
    %v124 = vpop.f32.mrf.mxu0
    %125 = vmatprep.mubr.f32.mxu0 0.0
    %126 = vmatmul.mubr.f32.gmra.mxu0 %v54
    %v127 = vpop.f32.mrf.mxu0
    %v128 = vadd.f32 %v47, %v127
    %v129 = vpop.f32.mrf.mxu0
    %130 = vdwg.mxu0
    %v131 = vld [vmem:[%s4] sm:$0xff]
    %v132 = vld [vmem:[%s4 + $0x8] sm:$0xff]
    %v133 = vld [vmem:[%s4 + $0x10] sm:$0xff]
    %v134 = vld [vmem:[%s4 + $0x18] sm:$0xff]
    %v135 = vld [vmem:[%s5] sm:$0x1]
    %v137 = vlaneseq
    %v138 = vshrl.u32 %v137, 7
    %v139 = vsub.s32 0, %v138
    %v140 = vrot.slane %v135, %v139
    %v143 = vsel %vm49, %v123, 0
    %v146 = vsel %vm49, %v128, 0
    %148 = vmatprep.subr.mxu0 0.0
    %149 = vmatpush1.msra.mxu0 0.0
    %150 = vmatprep.subr.mxu0 0.0
    %151 = vmatpush1.msra.mxu0 0.0
    %152 = vmatprep.subr.mxu0 0.0
    %153 = vmatpush1.msra.mxu0 0.0
    %154 = vmatprep.subr.mxu0 0.0
    %155 = vmatpush1.msra.mxu0 0.0
    %156 = vmatprep.subr.mxu0 0.0
    %157 = vmatpush1.msra.mxu0 0.0
    %158 = vmatprep.subr.mxu0 0.0
    %159 = vmatpush1.msra.mxu0 0.0
    %160 = vmatprep.subr.mxu0 0.0
    %161 = vmatpush1.msra.mxu0 0.0
    %162 = vmatprep.subr.mxu0 0.0
    %163 = vmatpush1.msra.mxu0 0.0
    %164 = vmatprep.subr.mxu0 0.0
    %165 = vmatpush1.msra.mxu0 0.0
    %166 = vmatprep.subr.mxu0 0.0
    %167 = vmatpush1.msra.mxu0 0.0
    %168 = vmatprep.subr.mxu0 0.0
    %169 = vmatpush1.msra.mxu0 0.0
    %170 = vmatprep.subr.mxu0 0.0
    %171 = vmatpush1.msra.mxu0 0.0
    %172 = vmatprep.subr.mxu0 0.0
    %173 = vmatpush1.msra.mxu0 %v134
    %174 = vmatprep.subr.mxu0 0.0
    %175 = vmatpush1.msra.mxu0 %v133
    %176 = vmatprep.subr.mxu0 0.0
    %177 = vmatpush1.msra.mxu0 %v132
    %178 = vmatprep.subr.mxu0 0.0
    %179 = vmatpush1.msra.mxu0 %v131
    %180 = vmatprep.subr.mxu0 0.0
    %181 = vmatpush2.msra.mxu0 0.0
    %182 = vmatprep.subr.mxu0 0.0
    %183 = vmatpush2.msra.mxu0 0.0
    %184 = vmatprep.subr.mxu0 0.0
    %185 = vmatpush2.msra.mxu0 0.0
    %186 = vmatprep.subr.mxu0 0.0
    %187 = vmatpush2.msra.mxu0 0.0
    %188 = vmatprep.subr.mxu0 0.0
    %189 = vmatpush2.msra.mxu0 0.0
    %190 = vmatprep.subr.mxu0 0.0
    %191 = vmatpush2.msra.mxu0 0.0
    %192 = vmatprep.subr.mxu0 0.0
    %193 = vmatpush2.msra.mxu0 0.0
    %194 = vmatprep.subr.mxu0 0.0
    %195 = vmatpush2.msra.mxu0 0.0
    %196 = vmatprep.subr.mxu0 0.0
    %197 = vmatpush2.msra.mxu0 0.0
    %198 = vmatprep.subr.mxu0 0.0
    %199 = vmatpush2.msra.mxu0 0.0
    %200 = vmatprep.subr.mxu0 0.0
    %201 = vmatpush2.msra.mxu0 0.0
    %202 = vmatprep.subr.mxu0 0.0
    %203 = vmatpush2.msra.mxu0 0.0
    %204 = vmatprep.subr.mxu0 0.0
    %205 = vmatpush2.msra.mxu0 0.0
    %206 = vmatprep.subr.mxu0 0.0
    %207 = vmatpush2.msra.mxu0 0.0
    %208 = vmatprep.subr.mxu0 0.0
    %209 = vmatpush2.msra.mxu0 0.0
    %210 = vmatprep.subr.mxu0 0.0
    %211 = vmatpush2.msra.mxu0 0.0
    %212 = vmatprep.mubr.f32.mxu0 0.0
    %213 = vmatmul.mubr.f32.gmra.mxu0 %v143
    %v214 = vpop.f32.mrf.mxu0
    %v215 = vadd.f32 %v140, %v214
    %v216 = vpop.f32.mrf.mxu0
    %217 = vmatprep.mubr.f32.mxu0 0.0
    %218 = vmatmul.mubr.f32.gmra.mxu0 %v146
    %v219 = vpop.f32.mrf.mxu0
    %v220 = vadd.f32 %v140, %v219
    %v221 = vpop.f32.mrf.mxu0
    %222 = vdwg.mxu0
    %v223 = vmul.f32 %v215, 0.5
    %v224 = vmul.f32 %v220, 0.5
    %v225 = vmul.f32 %v215, 0.70710677
    %v226 = vmul.f32 %v220, 0.70710677
    %v227 = verf.f32.pop %v225
    %v228 = verf.f32.pop %v226
    %v229 = vadd.f32 %v227, 1.0
    %v230 = vadd.f32 %v228, 1.0
    %v231 = vmul.f32 %v223, %v229
    %v232 = vmul.f32 %v224, %v230
    %v233 = vld [vmem:[%s6] sm:$0xff]
    %v234 = vld [vmem:[%s6 + $0x8] sm:$0xff]
    %v235 = vld [vmem:[%s6 + $0x10] sm:$0xff]
    %v236 = vld [vmem:[%s6 + $0x18] sm:$0xff]
    %v237 = vld [vmem:[%s6 + $0x20] sm:$0xff]
    %v238 = vld [vmem:[%s6 + $0x28] sm:$0xff]
    %v239 = vld [vmem:[%s6 + $0x30] sm:$0xff]
    %v240 = vld [vmem:[%s6 + $0x38] sm:$0xff]
    %v241 = vld [vmem:[%s6 + $0x40] sm:$0xff]
    %v242 = vld [vmem:[%s6 + $0x48] sm:$0xff]
    %v243 = vld [vmem:[%s6 + $0x50] sm:$0xff]
    %v244 = vld [vmem:[%s6 + $0x58] sm:$0xff]
    %v245 = vld [vmem:[%s6 + $0x60] sm:$0xff]
    %v246 = vld [vmem:[%s6 + $0x68] sm:$0xff]
    %v247 = vld [vmem:[%s6 + $0x70] sm:$0xff]
    %v248 = vld [vmem:[%s6 + $0x78] sm:$0xff]
    %v249 = vld [vmem:[%s7] sm:$0x1]
    %v251 = vlaneseq
    %v252 = vshrl.u32 %v251, 7
    %v253 = vsub.s32 0, %v252
    %v254 = vrot.slane %v249, %v253
    %256 = vmatprep.subr.mxu0 0.0
    %257 = vmatpush1.msra.mxu0 %v248
    %258 = vmatprep.subr.mxu0 0.0
    %259 = vmatpush1.msra.mxu0 %v247
    %260 = vmatprep.subr.mxu0 0.0
    %261 = vmatpush1.msra.mxu0 %v246
    %262 = vmatprep.subr.mxu0 0.0
    %263 = vmatpush1.msra.mxu0 %v245
    %264 = vmatprep.subr.mxu0 0.0
    %265 = vmatpush1.msra.mxu0 %v244
    %266 = vmatprep.subr.mxu0 0.0
    %267 = vmatpush1.msra.mxu0 %v243
    %268 = vmatprep.subr.mxu0 0.0
    %269 = vmatpush1.msra.mxu0 %v242
    %270 = vmatprep.subr.mxu0 0.0
    %271 = vmatpush1.msra.mxu0 %v241
    %272 = vmatprep.subr.mxu0 0.0
    %273 = vmatpush1.msra.mxu0 %v240
    %274 = vmatprep.subr.mxu0 0.0
    %275 = vmatpush1.msra.mxu0 %v239
    %276 = vmatprep.subr.mxu0 0.0
    %277 = vmatpush1.msra.mxu0 %v238
    %278 = vmatprep.subr.mxu0 0.0
    %279 = vmatpush1.msra.mxu0 %v237
    %280 = vmatprep.subr.mxu0 0.0
    %281 = vmatpush1.msra.mxu0 %v236
    %282 = vmatprep.subr.mxu0 0.0
    %283 = vmatpush1.msra.mxu0 %v235
    %284 = vmatprep.subr.mxu0 0.0
    %285 = vmatpush1.msra.mxu0 %v234
    %286 = vmatprep.subr.mxu0 0.0
    %287 = vmatpush1.msra.mxu0 %v233
    %288 = vmatprep.subr.mxu0 0.0
    %289 = vmatpush2.msra.mxu0 0.0
    %290 = vmatprep.subr.mxu0 0.0
    %291 = vmatpush2.msra.mxu0 0.0
    %292 = vmatprep.subr.mxu0 0.0
    %293 = vmatpush2.msra.mxu0 0.0
    %294 = vmatprep.subr.mxu0 0.0
    %295 = vmatpush2.msra.mxu0 0.0
    %296 = vmatprep.subr.mxu0 0.0
    %297 = vmatpush2.msra.mxu0 0.0
    %298 = vmatprep.subr.mxu0 0.0
    %299 = vmatpush2.msra.mxu0 0.0
    %300 = vmatprep.subr.mxu0 0.0
    %301 = vmatpush2.msra.mxu0 0.0
    %302 = vmatprep.subr.mxu0 0.0
    %303 = vmatpush2.msra.mxu0 0.0
    %304 = vmatprep.subr.mxu0 0.0
    %305 = vmatpush2.msra.mxu0 0.0
    %306 = vmatprep.subr.mxu0 0.0
    %307 = vmatpush2.msra.mxu0 0.0
    %308 = vmatprep.subr.mxu0 0.0
    %309 = vmatpush2.msra.mxu0 0.0
    %310 = vmatprep.subr.mxu0 0.0
    %311 = vmatpush2.msra.mxu0 0.0
    %312 = vmatprep.subr.mxu0 0.0
    %313 = vmatpush2.msra.mxu0 0.0
    %314 = vmatprep.subr.mxu0 0.0
    %315 = vmatpush2.msra.mxu0 0.0
    %316 = vmatprep.subr.mxu0 0.0
    %317 = vmatpush2.msra.mxu0 0.0
    %318 = vmatprep.subr.mxu0 0.0
    %319 = vmatpush2.msra.mxu0 0.0
    %320 = vmatprep.mubr.f32.mxu0 0.0
    %321 = vmatmul.mubr.f32.gmra.mxu0 %v231
    %v322 = vpop.f32.mrf.mxu0
    %v323 = vadd.f32 %v254, %v322
    %v324 = vpop.f32.mrf.mxu0
    %325 = vmatprep.mubr.f32.mxu0 0.0
    %326 = vmatmul.mubr.f32.gmra.mxu0 %v232
    %v327 = vpop.f32.mrf.mxu0
    %v328 = vadd.f32 %v254, %v327
    %v329 = vpop.f32.mrf.mxu0
    %330 = vdwg.mxu0
    %v331 = vadd.f32 %v123, %v323
    %v332 = vadd.f32 %v128, %v328
    %v333 = vld [vmem:[%s1] sm:$0xff]
    %v334 = vld [vmem:[%s1 + $0x8] sm:$0xff]
    %v335 = vadd.f32 %v331, %v333
    %v336 = vadd.f32 %v332, %v334
    %v337 = vsel %vm49, %v335, 0.0
    %338 = vadd.xlane.f32.xlu0 %v337
    %v339 = vpop.xlane.xlu0 %338
    %v340 = vsel %vm49, %v336, 0.0
    %341 = vadd.xlane.f32.xlu0 %v340
    %v342 = vpop.xlane.xlu0 %341
    %v343 = vrcp.pop 32.0
    %v344 = vmul.f32 %v339, %v343
    %v345 = vmul.f32 %v342, %v343
    %v346 = vsub.f32 %v335, %v344
    %v347 = vsub.f32 %v336, %v345
    %v348 = vmul.f32 %v346, %v346
    %v349 = vmul.f32 %v347, %v347
    %v350 = vsel %vm49, %v348, 0.0
    %351 = vadd.xlane.f32.xlu0 %v350
    %v352 = vpop.xlane.xlu0 %351
    %v353 = vsel %vm49, %v349, 0.0
    %354 = vadd.xlane.f32.xlu0 %v353
    %v355 = vpop.xlane.xlu0 %354
    %v356 = vmul.f32 %v352, %v343
    %v357 = vmul.f32 %v355, %v343
    %v358 = vadd.f32 %v356, 1e-12
    %v359 = vadd.f32 %v357, 1e-12
    %v360 = vrsqrt.pop %v358
    %v361 = vrsqrt.pop %v359
    %v362 = vmul.f32 %v346, %v360
    %v363 = vmul.f32 %v347, %v361
    %v364 = vld [vmem:[%s8] sm:$0x1]
    %v366 = vlaneseq
    %v367 = vshrl.u32 %v366, 7
    %v368 = vsub.s32 0, %v367
    %v369 = vrot.slane %v364, %v368
    %v371 = vmul.f32 %v362, %v369
    %v372 = vmul.f32 %v363, %v369
    %v373 = vld [vmem:[%s9] sm:$0x1]
    %v375 = vlaneseq
    %v376 = vshrl.u32 %v375, 7
    %v377 = vsub.s32 0, %v376
    %v378 = vrot.slane %v373, %v377
    %v380 = vadd.f32 %v371, %v378
    %v381 = vadd.f32 %v372, %v378
    %382 = vst.msk [vmem:[#allocation2] sm:$0xff] %vm49, %v380
    %383 = vst.msk [vmem:[#allocation2 + $0x8] sm:$0xff] %vm49, %v381
    // Predicated region
    $region42: #{_adapter_self_output_call.1} parent=1 // pred_check
      _
    $region43: #{_adapter_self_output_call.1} parent=1 // pred_check_branch
      %385 = sbr.rel (0) target = $region45
    $region44: #{_adapter_self_output_call.1} parent=1 // pred_region
      %s387 = ssub.s32 256, 256
      %388 = vsyncadd [#allocation3], %s387
      %s389 = sshll.u32 [#allocation2], 4
      %s390 = int_to_ptr.vmem [resolvable:$true] %s389
      %395 = dma.vmem_to_hbm [thread:$0]  %s390, 256, %s10, [#allocation3], 128, 128, 8
    $region45: #{_adapter_self_output_call.1} parent=1 // pred_fallthru
      _
    // Predicated region
    $region46: #{_adapter_self_output_call.1} parent=1 // pred_check
      _
    $region47: #{_adapter_self_output_call.1} parent=1 // pred_check_branch
      %397 = sbr.rel (0) target = $region49
    $region48: #{_adapter_self_output_call.1} parent=1 // pred_region
      %398 = dma.done [#allocation3], 256
    $region49: #{_adapter_self_output_call.1} parent=1 // pred_fallthru
      _
    %399 = vsyncpa [#allocation3], 1

</llo_original>
